<compile_context>
chip_gen: v7x
topology: tpu7x:2x2x1
jax: 0.10.0
libtpu: 0.0.40
codegen_flags: <defaults>
</compile_context>

<pallas_src>
import functools

import jax
import jax.numpy as jnp
from jax.experimental import pallas as pl
from jax.experimental.pallas import tpu as pltpu

LANE = 128                        # lanes (last dim -> vreg lanes)
SUBLANE = 8                       # f32 sublane tile
CHUNK_ROWS = 32                   # per-step chunk: int8-tile aligned, vreg-friendly
MAX_BLOCK_ROWS = 8192             # 4 MiB per f32 input block per grid step
ALIGN_ELEMS = CHUNK_ROWS * LANE   # 4096-element kernel alignment


def _elementwise_focal(x, y, alpha, gamma):
    """Numerically-stable elementwise focal loss.

    Produces exactly the values of the PyTorch branches:
      log_probs   = x>=0 ?  softplus(x,-1,50) : x - softplus(x,1,50)
      log_1_probs = log_probs - x
      loss        = (y*a*log_probs + (1-y)*(1-a)*log_1_probs) * -|y-sigmoid(x)|^g
    """
    t = jnp.exp(-jnp.abs(x))                    # exp(-|x|) in (0, 1]
    lt = jnp.log1p(t)
    log_probs = jnp.minimum(x, 0.0) - lt        # log(sigmoid(x))
    inv_1pt = 1.0 / (1.0 + t)
    probs = jnp.where(x >= 0.0, inv_1pt, t * inv_1pt)   # sigmoid(x), exact
    d = jnp.abs(y - probs)

    g = float(gamma)
    if g == 1.0:
        dg = d
    elif g == 2.0:                              # common case: no pow()
        dg = d * d
    elif g == 3.0:
        dg = d * d * d
    elif g == 4.0:
        d2 = d * d
        dg = d2 * d2
    else:                                       # d >= 0; log(0)*g -> -inf -> exp -> 0
        dg = jnp.exp(g * jnp.log(d))
    coeff = -dg

    a = float(alpha)
    w = (2.0 * a - 1.0) * y + (1.0 - a)         # y*a + (1-y)*(1-a)
    u = (1.0 - a) * (1.0 - y)                   # (1-y)*(1-a)
    # w*log_probs - u*x  ==  y*a*log_probs + (1-y)*(1-a)*log_1_probs
    return (w * log_probs - u * x) * coeff


def _focal_loss_kernel(logits_ref, label_ref, out_ref, *,
                       alpha, gamma, n_blocks, blocks_per_core,
                       n_chunks_full, n_chunks_last, gate_blocks):
    c = pl.program_id(0)            # TensorCore split ("parallel")
    i = pl.program_id(1)            # row-block reduction loop ("arbitrary")

    @pl.when(i == 0)
    def _init():
        out_ref[...] = jnp.zeros_like(out_ref)

    blk = c * blocks_per_core + i   # logical block index (may exceed n_blocks-1)

    def process(n_chunks):
        def body(ci, acc):
            row0 = pl.multiple_of(ci * CHUNK_ROWS, CHUNK_ROWS)
            x = logits_ref[pl.ds(row0, CHUNK_ROWS), :].astype(jnp.float32)
            y = label_ref[pl.ds(row0, CHUNK_ROWS), :].astype(jnp.float32)
            loss = _elementwise_focal(x, y, alpha, gamma)
            return acc + loss.reshape(CHUNK_ROWS // SUBLANE, SUBLANE, LANE).sum(axis=0)

        acc = jax.lax.fori_loop(0, n_chunks, body,
                                jnp.zeros((SUBLANE, LANE), jnp.float32),
                                unroll=2)
        out_ref[...] += acc

    if n_chunks_last != n_chunks_full:
        # A statically-known partial last block exists: full blocks take one
        # path, the straddling block runs fewer (static) chunks. Duplicated
        # clamped blocks (blk >= n_blocks) match neither branch -> skipped.
        @pl.when(blk < n_blocks - 1)
        def _full():
            process(n_chunks_full)

        @pl.when(blk == n_blocks - 1)
        def _last():
            process(n_chunks_last)
    elif gate_blocks:
        # Grid padded with duplicated (clamped) blocks: skip them entirely.
        @pl.when(blk < n_blocks)
        def _valid():
            process(n_chunks_full)
    else:
        process(n_chunks_full)


def _num_tensorcores():
    """2 for multi-TensorCore parts (v4 / v5p / v7x megacore); 1 otherwise."""
    try:
        kind = jax.devices()[0].device_kind.lower()
    except Exception:
        return 1
    if any(tag in kind for tag in ("v4", "v5p", "7x")):
        return 2
    return 1


def focal_loss_v1(logits, label, alpha=0.25, gamma=2.0, reduction="mean",
                  *, max_block_rows=MAX_BLOCK_ROWS):
    """Pallas TPU implementation of FocalLossV1.forward ('mean' / 'sum')."""
    if reduction not in ("mean", "sum"):
        # TODO(synk): reduction='none' (per-element output) not implemented.
        raise NotImplementedError("only 'mean' and 'sum' reductions implemented")
    alpha = float(alpha)
    gamma = float(gamma)
    n_total = int(logits.size)
    if n_total == 0:
        raise ValueError("empty input")

    # Keep labels narrow in HBM; the kernel upcasts per 32x128 chunk.
    if label.dtype == jnp.bool_:
        label = label.astype(jnp.int8)

    flat_x = logits.reshape(-1)
    flat_y = label.reshape(-1)

    # The kernel consumes the 4096-element-aligned prefix (free reshape, no
    # pad copy); the ragged tail (< 4096 elements) is a tiny fused JAX sum.
    main = (n_total // ALIGN_ELEMS) * ALIGN_ELEMS
    rows = main // LANE                              # multiple of 32

    total = jnp.zeros((), jnp.float32)
    if main < n_total:
        tail_x = flat_x[main:].astype(jnp.float32)
        tail_y = flat_y[main:].astype(jnp.float32)
        total = total + jnp.sum(_elementwise_focal(tail_x, tail_y, alpha, gamma))

    if rows > 0:
        x2d = (flat_x if main == n_total else flat_x[:main]).reshape(rows, LANE)
        y2d = (flat_y if main == n_total else flat_y[:main]).reshape(rows, LANE)

        max_block_rows = max(CHUNK_ROWS,
                             (int(max_block_rows) // CHUNK_ROWS) * CHUNK_ROWS)
        block_rows = min(max_block_rows, rows)       # multiple of 32
        n_blocks = pl.cdiv(rows, block_rows)
        last_valid = rows - (n_blocks - 1) * block_rows   # multiple of 32

        num_cores = _num_tensorcores() if n_blocks >= 2 else 1
        bpc = pl.cdiv(n_blocks, num_cores)
        grid = (num_cores, bpc)

        kernel = functools.partial(
            _focal_loss_kernel,
            alpha=alpha, gamma=gamma,
            n_blocks=int(n_blocks),
            blocks_per_core=int(bpc),
            n_chunks_full=int(block_rows // CHUNK_ROWS),
            n_chunks_last=int(last_valid // CHUNK_ROWS),
            gate_blocks=bool(num_cores * bpc != n_blocks),
        )

        def in_map(c, i):
            # Clamp so the DMA stays in range for duplicated blocks; their
            # compute is skipped inside the kernel.
            return (jnp.minimum(c * bpc + i, n_blocks - 1), 0)

        partials = pl.pallas_call(
            kernel,
            out_shape=jax.ShapeDtypeStruct((num_cores * SUBLANE, LANE),
                                           jnp.float32),
            grid_spec=pltpu.PrefetchScalarGridSpec(
                num_scalar_prefetch=0,
                grid=grid,
                in_specs=[
                    pl.BlockSpec((block_rows, LANE), in_map),
                    pl.BlockSpec((block_rows, LANE), in_map),
                ],
                out_specs=pl.BlockSpec((SUBLANE, LANE), lambda c, i: (c, 0)),
            ),
            compiler_params=pltpu.CompilerParams(
                dimension_semantics=("parallel", "arbitrary"),
                vmem_limit_bytes=32 * 1024 * 1024,
            ),
        )(x2d, y2d)
        total = total + jnp.sum(partials)

    if reduction == "mean":
        total = total / float(n_total)
    return total


def _focal_loss_ref(logits, label, alpha=0.25, gamma=2.0, reduction="mean"):
    """Pure-JAX mirror of the PyTorch FocalLossV1.forward (for validation)."""
    x = logits.astype(jnp.float32)
    y = label.astype(jnp.float32)
    probs = jax.nn.sigmoid(x)
    coeff = -(jnp.abs(y - probs) ** gamma)
    sp_neg = jnp.where(-x > 50.0, x, -jnp.log1p(jnp.exp(-x)))   # softplus(x,-1,50)
    sp_pos = jnp.where(x > 50.0, x, jnp.log1p(jnp.exp(x)))      # softplus(x, 1,50)
    log_probs = jnp.where(x >= 0, sp_neg, x - sp_pos)
    log_1_probs = jnp.where(x >= 0, -x + sp_neg, -sp_pos)
    loss = (y * alpha * log_probs + (1.0 - y) * (1.0 - alpha) * log_1_probs) * coeff
    return jnp.mean(loss) if reduction == "mean" else jnp.sum(loss)


if __name__ == "__main__":
    key = jax.random.PRNGKey(0)
    k = jax.random.split(key, 8)

    # 1) Small NCHW, f32 {0,1} labels, defaults, 'mean'. Aligned N (no tail).
    x1 = jax.random.normal(k[0], (2, 4, 32, 32), dtype=jnp.float32)
    y1 = jax.random.bernoulli(k[1], 0.5, (2, 4, 32, 32)).astype(jnp.float32)
    out1 = jax.block_until_ready(focal_loss_v1(x1, y1))
    ref1 = _focal_loss_ref(x1, y1)
    assert jnp.allclose(out1, ref1, rtol=1e-5, atol=1e-6), (out1, ref1)

    # 2) Ragged N (not a multiple of 4096) + bool labels (int8 HBM path), 'sum'.
    x2 = jax.random.normal(k[2], (2, 4, 24, 50), dtype=jnp.float32)
    y2 = jax.random.bernoulli(k[3], 0.5, (2, 4, 24, 50))        # bool labels
    out2 = jax.block_until_ready(focal_loss_v1(x2, y2, reduction="sum"))
    ref2 = _focal_loss_ref(x2, y2, reduction="sum")
    assert jnp.allclose(out2, ref2, rtol=1e-5, atol=1e-4), (out2, ref2)

    # 3) Multi-block grid with a partial (straddling) last block and
    #    non-default alpha/gamma, exercised at a small shape via max_block_rows.
    x3 = jax.random.normal(k[4], (2, 3, 40, 128), dtype=jnp.float32)
    y3 = jax.random.bernoulli(k[5], 0.3, (2, 3, 40, 128)).astype(jnp.float32)
    out3 = jax.block_until_ready(
        focal_loss_v1(x3, y3, alpha=0.4, gamma=3.0, max_block_rows=96))
    ref3 = _focal_loss_ref(x3, y3, alpha=0.4, gamma=3.0)
    assert jnp.allclose(out3, ref3, rtol=1e-5, atol=1e-6), (out3, ref3)

    print("KERNEL_OK")
</pallas_src>

<mosaic_0001>
module attributes {stable_mosaic.version = 11 : i64} {
  func.func @_focal_loss_kernel(%arg0: i32, %arg1: i32, %arg2: memref<64x128xf32, #tpu.memory_space<vmem>>, %arg3: memref<64x128xf32, #tpu.memory_space<vmem>>, %arg4: memref<8x128xf32, #tpu.memory_space<vmem>>) attributes {dimension_semantics = [#tpu.dimension_semantics<parallel>, #tpu.dimension_semantics<arbitrary>], iteration_bounds = array<i64: 1, 1>, scalar_prefetch = 0 : i64, scratch_operands = 0 : i64, tpu.core_type = #tpu.core_type<tc>, window_params = [{transform_indices = @transform_0, window_bounds = array<i64: 64, 128>}, {transform_indices = @transform_1, window_bounds = array<i64: 64, 128>}, {transform_indices = @transform_2, window_bounds = array<i64: 8, 128>}]} {
    %c0_i32 = arith.constant 0 : i32
    %0 = arith.cmpi eq, %arg1, %c0_i32 : i32
    %1 = arith.extui %0 : i1 to i32
    %c0_i32_0 = arith.constant 0 : i32
    %2 = arith.cmpi ne, %1, %c0_i32_0 : i32
    scf.if %2 {
      %cst_32 = arith.constant 0.000000e+00 : f32
      %91 = vector.broadcast %cst_32 : f32 to vector<8x128xf32>
      %c0_33 = arith.constant 0 : index
      %c0_34 = arith.constant 0 : index
      %92 = vector.load %arg4[%c0_33, %c0_34] : memref<8x128xf32, #tpu.memory_space<vmem>>, vector<8x128xf32>
      tpu.vector_store %arg4[%c0_33, %c0_34], %91 {strides = array<i32>} : memref<8x128xf32, #tpu.memory_space<vmem>>, vector<8x128xf32>,
    } else {
    }
    %cst = arith.constant 0.000000e+00 : f32
    %3 = vector.broadcast %cst : f32 to vector<8x128xf32>
    %c0_i32_1 = arith.constant 0 : i32
    %c32_i32 = arith.constant 32 : i32
    %4 = arith.muli %c0_i32_1, %c32_i32 : i32
    %5 = tpu.assume_multiple %4, 32 : i32
    %6 = arith.index_cast %5 : i32 to index
    %c0 = arith.constant 0 : index
    %7 = vector.load %arg2[%6, %c0] : memref<64x128xf32, #tpu.memory_space<vmem>>, vector<32x128xf32>
    %8 = arith.index_cast %5 : i32 to index
    %c0_2 = arith.constant 0 : index
    %9 = vector.load %arg3[%8, %c0_2] : memref<64x128xf32, #tpu.memory_space<vmem>>, vector<32x128xf32>
    %10 = math.absf %7 : vector<32x128xf32>
    %cst_3 = arith.constant 0.000000e+00 : f32
    %11 = vector.broadcast %cst_3 : f32 to vector<32x128xf32>
    %12 = arith.subf %11, %10 : vector<32x128xf32>
    %13 = math.exp %12 : vector<32x128xf32>
    %14 = math.log1p %13 : vector<32x128xf32>
    %cst_4 = arith.constant 0.000000e+00 : f32
    %15 = vector.broadcast %cst_4 : f32 to vector<32x128xf32>
    %16 = arith.minimumf %7, %15 : vector<32x128xf32>
    %17 = arith.subf %16, %14 : vector<32x128xf32>
    %cst_5 = arith.constant 1.000000e+00 : f32
    %18 = vector.broadcast %cst_5 : f32 to vector<32x128xf32>
    %19 = arith.addf %18, %13 : vector<32x128xf32>
    %cst_6 = arith.constant 1.000000e+00 : f32
    %20 = vector.broadcast %cst_6 : f32 to vector<32x128xf32>
    %21 = arith.divf %20, %19 : vector<32x128xf32>
    %cst_7 = arith.constant 0.000000e+00 : f32
    %22 = vector.broadcast %cst_7 : f32 to vector<32x128xf32>
    %23 = arith.cmpf oge, %7, %22 : vector<32x128xf32>
    %24 = arith.mulf %13, %21 : vector<32x128xf32>
    %25 = arith.select %23, %21, %24 : vector<32x128xi1>, vector<32x128xf32>
    %26 = arith.subf %9, %25 : vector<32x128xf32>
    %27 = math.absf %26 : vector<32x128xf32>
    %28 = arith.mulf %27, %27 : vector<32x128xf32>
    %cst_8 = arith.constant 0.000000e+00 : f32
    %29 = vector.broadcast %cst_8 : f32 to vector<32x128xf32>
    %30 = arith.subf %29, %28 : vector<32x128xf32>
    %cst_9 = arith.constant -5.000000e-01 : f32
    %31 = vector.broadcast %cst_9 : f32 to vector<32x128xf32>
    %32 = arith.mulf %31, %9 : vector<32x128xf32>
    %cst_10 = arith.constant 7.500000e-01 : f32
    %33 = vector.broadcast %cst_10 : f32 to vector<32x128xf32>
    %34 = arith.addf %32, %33 : vector<32x128xf32>
    %cst_11 = arith.constant 1.000000e+00 : f32
    %35 = vector.broadcast %cst_11 : f32 to vector<32x128xf32>
    %36 = arith.subf %35, %9 : vector<32x128xf32>
    %cst_12 = arith.constant 7.500000e-01 : f32
    %37 = vector.broadcast %cst_12 : f32 to vector<32x128xf32>
    %38 = arith.mulf %37, %36 : vector<32x128xf32>
    %39 = arith.mulf %34, %17 : vector<32x128xf32>
    %40 = arith.mulf %38, %7 : vector<32x128xf32>
    %41 = arith.subf %39, %40 : vector<32x128xf32>
    %42 = arith.mulf %41, %30 : vector<32x128xf32>
    %43 = vector.shape_cast %42 : vector<32x128xf32> to vector<4x8x128xf32>
    %cst_13 = arith.constant dense<0.000000e+00> : vector<8x128xf32>
    %44 = vector.multi_reduction <add>, %43, %cst_13 [0] : vector<4x8x128xf32> to vector<8x128xf32>
    %45 = arith.addf %3, %44 : vector<8x128xf32>
    %c1_i32 = arith.constant 1 : i32
    %c32_i32_14 = arith.constant 32 : i32
    %46 = arith.muli %c1_i32, %c32_i32_14 : i32
    %47 = tpu.assume_multiple %46, 32 : i32
    %48 = arith.index_cast %47 : i32 to index
    %c0_15 = arith.constant 0 : index
    %49 = vector.load %arg2[%48, %c0_15] : memref<64x128xf32, #tpu.memory_space<vmem>>, vector<32x128xf32>
    %50 = arith.index_cast %47 : i32 to index
    %c0_16 = arith.constant 0 : index
    %51 = vector.load %arg3[%50, %c0_16] : memref<64x128xf32, #tpu.memory_space<vmem>>, vector<32x128xf32>
    %52 = math.absf %49 : vector<32x128xf32>
    %cst_17 = arith.constant 0.000000e+00 : f32
    %53 = vector.broadcast %cst_17 : f32 to vector<32x128xf32>
    %54 = arith.subf %53, %52 : vector<32x128xf32>
    %55 = math.exp %54 : vector<32x128xf32>
    %56 = math.log1p %55 : vector<32x128xf32>
    %cst_18 = arith.constant 0.000000e+00 : f32
    %57 = vector.broadcast %cst_18 : f32 to vector<32x128xf32>
    %58 = arith.minimumf %49, %57 : vector<32x128xf32>
    %59 = arith.subf %58, %56 : vector<32x128xf32>
    %cst_19 = arith.constant 1.000000e+00 : f32
    %60 = vector.broadcast %cst_19 : f32 to vector<32x128xf32>
    %61 = arith.addf %60, %55 : vector<32x128xf32>
    %cst_20 = arith.constant 1.000000e+00 : f32
    %62 = vector.broadcast %cst_20 : f32 to vector<32x128xf32>
    %63 = arith.divf %62, %61 : vector<32x128xf32>
    %cst_21 = arith.constant 0.000000e+00 : f32
    %64 = vector.broadcast %cst_21 : f32 to vector<32x128xf32>
    %65 = arith.cmpf oge, %49, %64 : vector<32x128xf32>
    %66 = arith.mulf %55, %63 : vector<32x128xf32>
    %67 = arith.select %65, %63, %66 : vector<32x128xi1>, vector<32x128xf32>
    %68 = arith.subf %51, %67 : vector<32x128xf32>
    %69 = math.absf %68 : vector<32x128xf32>
    %70 = arith.mulf %69, %69 : vector<32x128xf32>
    %cst_22 = arith.constant 0.000000e+00 : f32
    %71 = vector.broadcast %cst_22 : f32 to vector<32x128xf32>
    %72 = arith.subf %71, %70 : vector<32x128xf32>
    %cst_23 = arith.constant -5.000000e-01 : f32
    %73 = vector.broadcast %cst_23 : f32 to vector<32x128xf32>
    %74 = arith.mulf %73, %51 : vector<32x128xf32>
    %cst_24 = arith.constant 7.500000e-01 : f32
    %75 = vector.broadcast %cst_24 : f32 to vector<32x128xf32>
    %76 = arith.addf %74, %75 : vector<32x128xf32>
    %cst_25 = arith.constant 1.000000e+00 : f32
    %77 = vector.broadcast %cst_25 : f32 to vector<32x128xf32>
    %78 = arith.subf %77, %51 : vector<32x128xf32>
    %cst_26 = arith.constant 7.500000e-01 : f32
    %79 = vector.broadcast %cst_26 : f32 to vector<32x128xf32>
    %80 = arith.mulf %79, %78 : vector<32x128xf32>
    %81 = arith.mulf %76, %59 : vector<32x128xf32>
    %82 = arith.mulf %80, %49 : vector<32x128xf32>
    %83 = arith.subf %81, %82 : vector<32x128xf32>
    %84 = arith.mulf %83, %72 : vector<32x128xf32>
    %85 = vector.shape_cast %84 : vector<32x128xf32> to vector<4x8x128xf32>
    %cst_27 = arith.constant dense<0.000000e+00> : vector<8x128xf32>
    %86 = vector.multi_reduction <add>, %85, %cst_27 [0] : vector<4x8x128xf32> to vector<8x128xf32>
    %87 = arith.addf %45, %86 : vector<8x128xf32>
    %c2_i32 = arith.constant 2 : i32
    %c0_28 = arith.constant 0 : index
    %c0_29 = arith.constant 0 : index
    %88 = vector.load %arg4[%c0_28, %c0_29] : memref<8x128xf32, #tpu.memory_space<vmem>>, vector<8x128xf32>
    %89 = arith.addf %88, %87 : vector<8x128xf32>
    %c0_30 = arith.constant 0 : index
    %c0_31 = arith.constant 0 : index
    %90 = vector.load %arg4[%c0_30, %c0_31] : memref<8x128xf32, #tpu.memory_space<vmem>>, vector<8x128xf32>
    tpu.vector_store %arg4[%c0_30, %c0_31], %89 {strides = array<i32>} : memref<8x128xf32, #tpu.memory_space<vmem>>, vector<8x128xf32>,
    return
  }
  func.func @transform_0(%arg0: i32, %arg1: i32) -> (i32, i32) {
    %c1_i32 = arith.constant 1 : i32
    %0 = arith.muli %arg0, %c1_i32 : i32
    %1 = arith.addi %0, %arg1 : i32
    %c0_i32 = arith.constant 0 : i32
    %2 = arith.minsi %1, %c0_i32 : i32
    %c0_i32_0 = arith.constant 0 : i32
    %c0_i32_1 = arith.constant 0 : i32
    return %2, %c0_i32_0 : i32, i32
  }
  func.func @transform_1(%arg0: i32, %arg1: i32) -> (i32, i32) {
    %c1_i32 = arith.constant 1 : i32
    %0 = arith.muli %arg0, %c1_i32 : i32
    %1 = arith.addi %0, %arg1 : i32
    %c0_i32 = arith.constant 0 : i32
    %2 = arith.minsi %1, %c0_i32 : i32
    %c0_i32_0 = arith.constant 0 : i32
    %c0_i32_1 = arith.constant 0 : i32
    return %2, %c0_i32_0 : i32, i32
  }
  func.func @transform_2(%arg0: i32, %arg1: i32) -> (i32, i32) {
    %c0_i32 = arith.constant 0 : i32
    %c0_i32_0 = arith.constant 0 : i32
    return %arg0, %c0_i32 : i32, i32
  }
}

</mosaic_0001>

<llo_original>
// kernel: tpu_custom_call.1
$region0: #{tpu_custom_call.1}
  #allocation0 [shape = 'u32[]', space=smem, size = 0x4, offset = 0x4, fixed_abs, tag = 'smem constant byte address 0x4 - core index']
  #allocation1 [shape = 'u32[144,128]{1,0:T(1,128)}', space=vmem, size = 0x12000, scoped, tag = 'internal scratch']
  %s0 = inlined_call_operand.hbm [shape: f32[64,128], index: 0, kind: input, shape index: {}]
  %s1 = inlined_call_operand.hbm [shape: f32[64,128], index: 1, kind: input, shape index: {}]
  %s2 = inlined_call_operand.hbm [shape: f32[8,128], index: 2, kind: output, shape index: {}]
  %s3 = sld [smem:[#allocation0]]
  $region30: #{tpu_custom_call.1} parent=0
    _
  %s5 = ssub.s32 1, %s3
  %s6 = scalar_select 0, %s5, %s3
  $region1: #{tpu_custom_call.1} parent=0
    #allocation2 [shape = 'u8[32768]{0}', space=vmem, size = 0x8000, scoped, tag = 'input window, operand 0, single buffered']
    #allocation3 [shape = 's32[1]{0}', space=sflag, size = 0x4, scoped, tag = 'scoped memory for tpu_custom_call.1']
    #allocation4 [shape = 's32[1]{0}', space=sflag, size = 0x4, scoped, tag = 'scoped memory for tpu_custom_call.1']
    #allocation5 [shape = 'u8[32768]{0}', space=vmem, size = 0x8000, scoped, tag = 'input window, operand 1, single buffered']
    #allocation6 [shape = 's32[1]{0}', space=sflag, size = 0x4, scoped, tag = 'scoped memory for tpu_custom_call.1']
    #allocation7 [shape = 'u8[4096]{0}', space=vmem, size = 0x1000, scoped, tag = 'output window, operand 0, single buffered']
    %7 = vsyncpa [#allocation3], 0
    %8 = vsyncpa [#allocation6], 0
    %9 = vsyncpa [#allocation4], 0
    // Predicated region
    $region2: #{tpu_custom_call.1} parent=1 // pred_check
      _
    $region3: #{tpu_custom_call.1} parent=1 // pred_check_branch
      %11 = sbr.rel (0) target = $region5
    $region4: #{tpu_custom_call.1} parent=1 // pred_region
      %s12 = sadd.s32 0, 0
      %p13 = scmp.lt.s32.totalorder %s12, 0
      %s14 = scalar_select %p13, %s12, 0
      %s15 = smul.u32 8, %s14
      %s17 = ssub.s32 1024, 1024
      %18 = vsyncadd [#allocation3], %s17
      %s19 = smul.addr %s15, 128
      %s20 = scalar_lea.hbm %s0, %s19
      %s21 = sshll.u32 [#allocation2], 4
      %s22 = int_to_ptr.vmem [resolvable:$true] %s21
      %27 = dma.hbm_to_vmem [thread:$0]  %s20, 1024, %s22, [#allocation3], 128, 128, 8
    $region5: #{tpu_custom_call.1} parent=1 // pred_fallthru
      _
    // Predicated region
    $region6: #{tpu_custom_call.1} parent=1 // pred_check
      _
    $region7: #{tpu_custom_call.1} parent=1 // pred_check_branch
      %29 = sbr.rel (0) target = $region9
    $region8: #{tpu_custom_call.1} parent=1 // pred_region
      %s30 = sadd.s32 0, 0
      %p31 = scmp.lt.s32.totalorder %s30, 0
      %s32 = scalar_select %p31, %s30, 0
      %s33 = smul.u32 8, %s32
      %s35 = ssub.s32 1024, 1024
      %36 = vsyncadd [#allocation6], %s35
      %s37 = smul.addr %s33, 128
      %s38 = scalar_lea.hbm %s1, %s37
      %s39 = sshll.u32 [#allocation5], 4
      %s40 = int_to_ptr.vmem [resolvable:$true] %s39
      %45 = dma.hbm_to_vmem [thread:$0]  %s38, 1024, %s40, [#allocation6], 128, 128, 8
    $region9: #{tpu_custom_call.1} parent=1 // pred_fallthru
      _
    // Predicated region
    $region10: #{tpu_custom_call.1} parent=1 // pred_check
      _
    $region11: #{tpu_custom_call.1} parent=1 // pred_check_branch
      %47 = sbr.rel (0) target = $region13
    $region12: #{tpu_custom_call.1} parent=1 // pred_region
      %48 = dma.done [#allocation3], 1024
    $region13: #{tpu_custom_call.1} parent=1 // pred_fallthru
      _
    // Predicated region
    $region14: #{tpu_custom_call.1} parent=1 // pred_check
      _
    $region15: #{tpu_custom_call.1} parent=1 // pred_check_branch
      %50 = sbr.rel (0) target = $region17
    $region16: #{tpu_custom_call.1} parent=1 // pred_region
      %51 = dma.done [#allocation6], 1024
    $region17: #{tpu_custom_call.1} parent=1 // pred_fallthru
      _
    %s52 = sadd.s32 0, 0
    %p53 = scmp.lt.s32.totalorder %s52, 0
    %s54 = scalar_select %p53, %s52, 0
    %s55 = smul.u32 8, %s54
    %s56 = sadd.s32 0, 0
    %p57 = scmp.lt.s32.totalorder %s56, 0
    %s58 = scalar_select %p57, %s56, 0
    %s59 = smul.u32 8, %s58
    %p60 = scmp.eq.s32.totalorder 0, 0
    // Predicated region
    $region18: #{tpu_custom_call.1} parent=1 // pred_check
      %p61 = pneg %p60
    $region19: #{tpu_custom_call.1} parent=1 // pred_check_branch
      %63 = sbr.rel (%p61) target = $region21
    $region20: #{tpu_custom_call.1} parent=1 // pred_region
      %64 = vst [vmem:[#allocation7] sm:$0xff] 0.0
    $region21: #{tpu_custom_call.1} parent=1 // pred_fallthru
      _
    %v65 = vld [vmem:[#allocation2] sm:$0xff]
    %v66 = vld [vmem:[#allocation2 + $0x8] sm:$0xff]
    %v67 = vld [vmem:[#allocation2 + $0x10] sm:$0xff]
    %v68 = vld [vmem:[#allocation2 + $0x18] sm:$0xff]
    %v69 = vld [vmem:[#allocation5] sm:$0xff]
    %v70 = vld [vmem:[#allocation5 + $0x8] sm:$0xff]
    %v71 = vld [vmem:[#allocation5 + $0x10] sm:$0xff]
    %v72 = vld [vmem:[#allocation5 + $0x18] sm:$0xff]
    %v73 = vand.u32 2147483647, %v65
    %v74 = vand.u32 2147483647, %v66
    %v75 = vand.u32 2147483647, %v67
    %v76 = vand.u32 2147483647, %v68
    %v77 = vsub.f32 0.0, %v73
    %v78 = vsub.f32 0.0, %v74
    %v79 = vsub.f32 0.0, %v75
    %v80 = vsub.f32 0.0, %v76
    %v81 = vmul.f32 %v77, 1.442695
    %v82 = vpow.pop %v81
    %v83 = vmul.f32 %v78, 1.442695
    %v84 = vpow.pop %v83
    %v85 = vmul.f32 %v79, 1.442695
    %v86 = vpow.pop %v85
    %v87 = vmul.f32 %v80, 1.442695
    %v88 = vpow.pop %v87
    %v89 = vadd.f32 %v82, 1.0
    %v90 = vlog2.pop %v89
    %v91 = vmul.f32 %v90, 0.6931472
    %v92 = vmul.f32 -0.5, %v82
    %v93 = vadd.f32 %v92, 1.0
    %v94 = vmul.f32 %v93, %v82
    %v95 = vand.u32 2147483647, %v82
    %vm96 = vcmp.lt.f32.partialorder %v95, 0.0004427343
    %v97 = vsel %vm96, %v94, %v91
    %v98 = vadd.f32 %v84, 1.0
    %v99 = vlog2.pop %v98
    %v100 = vmul.f32 %v99, 0.6931472
    %v101 = vmul.f32 -0.5, %v84
    %v102 = vadd.f32 %v101, 1.0
    %v103 = vmul.f32 %v102, %v84
    %v104 = vand.u32 2147483647, %v84
    %vm105 = vcmp.lt.f32.partialorder %v104, 0.0004427343
    %v106 = vsel %vm105, %v103, %v100
    %v107 = vadd.f32 %v86, 1.0
    %v108 = vlog2.pop %v107
    %v109 = vmul.f32 %v108, 0.6931472
    %v110 = vmul.f32 -0.5, %v86
    %v111 = vadd.f32 %v110, 1.0
    %v112 = vmul.f32 %v111, %v86
    %v113 = vand.u32 2147483647, %v86
    %vm114 = vcmp.lt.f32.partialorder %v113, 0.0004427343
    %v115 = vsel %vm114, %v112, %v109
    %v116 = vadd.f32 %v88, 1.0
    %v117 = vlog2.pop %v116
    %v118 = vmul.f32 %v117, 0.6931472
    %v119 = vmul.f32 -0.5, %v88
    %v120 = vadd.f32 %v119, 1.0
    %v121 = vmul.f32 %v120, %v88
    %v122 = vand.u32 2147483647, %v88
    %vm123 = vcmp.lt.f32.partialorder %v122, 0.0004427343
    %v124 = vsel %vm123, %v121, %v118
    %v125 = vmin.f32 %v65, 0.0
    %v126 = vmin.f32 %v66, 0.0
    %v127 = vmin.f32 %v67, 0.0
    %v128 = vmin.f32 %v68, 0.0
    %v129 = vsub.f32 %v125, %v97
    %v130 = vsub.f32 %v126, %v106
    %v131 = vsub.f32 %v127, %v115
    %v132 = vsub.f32 %v128, %v124
    %v133 = vadd.f32 %v82, 1.0
    %v134 = vadd.f32 %v84, 1.0
    %v135 = vadd.f32 %v86, 1.0
    %v136 = vadd.f32 %v88, 1.0
    %v137 = vrcp.pop %v133
    %v138 = vmul.f32 1.0, %v137
    %v139 = vrcp.pop %v134
    %v140 = vmul.f32 1.0, %v139
    %v141 = vrcp.pop %v135
    %v142 = vmul.f32 1.0, %v141
    %v143 = vrcp.pop %v136
    %v144 = vmul.f32 1.0, %v143
    %vm145 = vcmp.ge.f32.partialorder %v65, 0.0
    %vm146 = vcmp.ge.f32.partialorder %v66, 0.0
    %vm147 = vcmp.ge.f32.partialorder %v67, 0.0
    %vm148 = vcmp.ge.f32.partialorder %v68, 0.0
    %v149 = vmul.f32 %v82, %v138
    %v150 = vmul.f32 %v84, %v140
    %v151 = vmul.f32 %v86, %v142
    %v152 = vmul.f32 %v88, %v144
    %v153 = vsel %vm145, %v138, %v149
    %v154 = vsel %vm146, %v140, %v150
    %v155 = vsel %vm147, %v142, %v151
    %v156 = vsel %vm148, %v144, %v152
    %v157 = vsub.f32 %v69, %v153
    %v158 = vsub.f32 %v70, %v154
    %v159 = vsub.f32 %v71, %v155
    %v160 = vsub.f32 %v72, %v156
    %v161 = vand.u32 2147483647, %v157
    %v162 = vand.u32 2147483647, %v158
    %v163 = vand.u32 2147483647, %v159
    %v164 = vand.u32 2147483647, %v160
    %v165 = vmul.f32 %v161, %v161
    %v166 = vmul.f32 %v162, %v162
    %v167 = vmul.f32 %v163, %v163
    %v168 = vmul.f32 %v164, %v164
    %v169 = vsub.f32 0.0, %v165
    %v170 = vsub.f32 0.0, %v166
    %v171 = vsub.f32 0.0, %v167
    %v172 = vsub.f32 0.0, %v168
    %v173 = vmul.f32 %v69, -0.5
    %v174 = vmul.f32 %v70, -0.5
    %v175 = vmul.f32 %v71, -0.5
    %v176 = vmul.f32 %v72, -0.5
    %v177 = vadd.f32 %v173, 0.75
    %v178 = vadd.f32 %v174, 0.75
    %v179 = vadd.f32 %v175, 0.75
    %v180 = vadd.f32 %v176, 0.75
    %v181 = vsub.f32 1.0, %v69
    %v182 = vsub.f32 1.0, %v70
    %v183 = vsub.f32 1.0, %v71
    %v184 = vsub.f32 1.0, %v72
    %v185 = vmul.f32 %v181, 0.75
    %v186 = vmul.f32 %v182, 0.75
    %v187 = vmul.f32 %v183, 0.75
    %v188 = vmul.f32 %v184, 0.75
    %v189 = vmul.f32 %v177, %v129
    %v190 = vmul.f32 %v178, %v130
    %v191 = vmul.f32 %v179, %v131
    %v192 = vmul.f32 %v180, %v132
    %v193 = vmul.f32 %v185, %v65
    %v194 = vmul.f32 %v186, %v66
    %v195 = vmul.f32 %v187, %v67
    %v196 = vmul.f32 %v188, %v68
    %v197 = vsub.f32 %v189, %v193
    %v198 = vsub.f32 %v190, %v194
    %v199 = vsub.f32 %v191, %v195
    %v200 = vsub.f32 %v192, %v196
    %v201 = vmul.f32 %v197, %v169
    %v202 = vmul.f32 %v198, %v170
    %v203 = vmul.f32 %v199, %v171
    %v204 = vmul.f32 %v200, %v172
    %v205 = vadd.f32 %v201, %v202
    %v206 = vadd.f32 %v205, %v203
    %v207 = vadd.f32 %v206, %v204
    %v208 = vadd.f32 %v207, 0.0
    %s209 = scalar_lea.vmem [#allocation2], 32
    %v210 = vld [vmem:[%s209] sm:$0xff]
    %v211 = vld [vmem:[%s209 + $0x8] sm:$0xff]
    %v212 = vld [vmem:[%s209 + $0x10] sm:$0xff]
    %v213 = vld [vmem:[%s209 + $0x18] sm:$0xff]
    %s214 = scalar_lea.vmem [#allocation5], 32
    %v215 = vld [vmem:[%s214] sm:$0xff]
    %v216 = vld [vmem:[%s214 + $0x8] sm:$0xff]
    %v217 = vld [vmem:[%s214 + $0x10] sm:$0xff]
    %v218 = vld [vmem:[%s214 + $0x18] sm:$0xff]
    %v219 = vand.u32 2147483647, %v210
    %v220 = vand.u32 2147483647, %v211
    %v221 = vand.u32 2147483647, %v212
    %v222 = vand.u32 2147483647, %v213
    %v223 = vsub.f32 0.0, %v219
    %v224 = vsub.f32 0.0, %v220
    %v225 = vsub.f32 0.0, %v221
    %v226 = vsub.f32 0.0, %v222
    %v227 = vmul.f32 %v223, 1.442695
    %v228 = vpow.pop %v227
    %v229 = vmul.f32 %v224, 1.442695
    %v230 = vpow.pop %v229
    %v231 = vmul.f32 %v225, 1.442695
    %v232 = vpow.pop %v231
    %v233 = vmul.f32 %v226, 1.442695
    %v234 = vpow.pop %v233
    %v235 = vadd.f32 %v228, 1.0
    %v236 = vlog2.pop %v235
    %v237 = vmul.f32 %v236, 0.6931472
    %v238 = vmul.f32 -0.5, %v228
    %v239 = vadd.f32 %v238, 1.0
    %v240 = vmul.f32 %v239, %v228
    %v241 = vand.u32 2147483647, %v228
    %vm242 = vcmp.lt.f32.partialorder %v241, 0.0004427343
    %v243 = vsel %vm242, %v240, %v237
    %v244 = vadd.f32 %v230, 1.0
    %v245 = vlog2.pop %v244
    %v246 = vmul.f32 %v245, 0.6931472
    %v247 = vmul.f32 -0.5, %v230
    %v248 = vadd.f32 %v247, 1.0
    %v249 = vmul.f32 %v248, %v230
    %v250 = vand.u32 2147483647, %v230
    %vm251 = vcmp.lt.f32.partialorder %v250, 0.0004427343
    %v252 = vsel %vm251, %v249, %v246
    %v253 = vadd.f32 %v232, 1.0
    %v254 = vlog2.pop %v253
    %v255 = vmul.f32 %v254, 0.6931472
    %v256 = vmul.f32 -0.5, %v232
    %v257 = vadd.f32 %v256, 1.0
    %v258 = vmul.f32 %v257, %v232
    %v259 = vand.u32 2147483647, %v232
    %vm260 = vcmp.lt.f32.partialorder %v259, 0.0004427343
    %v261 = vsel %vm260, %v258, %v255
    %v262 = vadd.f32 %v234, 1.0
    %v263 = vlog2.pop %v262
    %v264 = vmul.f32 %v263, 0.6931472
    %v265 = vmul.f32 -0.5, %v234
    %v266 = vadd.f32 %v265, 1.0
    %v267 = vmul.f32 %v266, %v234
    %v268 = vand.u32 2147483647, %v234
    %vm269 = vcmp.lt.f32.partialorder %v268, 0.0004427343
    %v270 = vsel %vm269, %v267, %v264
    %v271 = vmin.f32 %v210, 0.0
    %v272 = vmin.f32 %v211, 0.0
    %v273 = vmin.f32 %v212, 0.0
    %v274 = vmin.f32 %v213, 0.0
    %v275 = vsub.f32 %v271, %v243
    %v276 = vsub.f32 %v272, %v252
    %v277 = vsub.f32 %v273, %v261
    %v278 = vsub.f32 %v274, %v270
    %v279 = vadd.f32 %v228, 1.0
    %v280 = vadd.f32 %v230, 1.0
    %v281 = vadd.f32 %v232, 1.0
    %v282 = vadd.f32 %v234, 1.0
    %v283 = vrcp.pop %v279
    %v284 = vmul.f32 1.0, %v283
    %v285 = vrcp.pop %v280
    %v286 = vmul.f32 1.0, %v285
    %v287 = vrcp.pop %v281
    %v288 = vmul.f32 1.0, %v287
    %v289 = vrcp.pop %v282
    %v290 = vmul.f32 1.0, %v289
    %vm291 = vcmp.ge.f32.partialorder %v210, 0.0
    %vm292 = vcmp.ge.f32.partialorder %v211, 0.0
    %vm293 = vcmp.ge.f32.partialorder %v212, 0.0
    %vm294 = vcmp.ge.f32.partialorder %v213, 0.0
    %v295 = vmul.f32 %v228, %v284
    %v296 = vmul.f32 %v230, %v286
    %v297 = vmul.f32 %v232, %v288
    %v298 = vmul.f32 %v234, %v290
    %v299 = vsel %vm291, %v284, %v295
    %v300 = vsel %vm292, %v286, %v296
    %v301 = vsel %vm293, %v288, %v297
    %v302 = vsel %vm294, %v290, %v298
    %v303 = vsub.f32 %v215, %v299
    %v304 = vsub.f32 %v216, %v300
    %v305 = vsub.f32 %v217, %v301
    %v306 = vsub.f32 %v218, %v302
    %v307 = vand.u32 2147483647, %v303
    %v308 = vand.u32 2147483647, %v304
    %v309 = vand.u32 2147483647, %v305
    %v310 = vand.u32 2147483647, %v306
    %v311 = vmul.f32 %v307, %v307
    %v312 = vmul.f32 %v308, %v308
    %v313 = vmul.f32 %v309, %v309
    %v314 = vmul.f32 %v310, %v310
    %v315 = vsub.f32 0.0, %v311
    %v316 = vsub.f32 0.0, %v312
    %v317 = vsub.f32 0.0, %v313
    %v318 = vsub.f32 0.0, %v314
    %v319 = vmul.f32 %v215, -0.5
    %v320 = vmul.f32 %v216, -0.5
    %v321 = vmul.f32 %v217, -0.5
    %v322 = vmul.f32 %v218, -0.5
    %v323 = vadd.f32 %v319, 0.75
    %v324 = vadd.f32 %v320, 0.75
    %v325 = vadd.f32 %v321, 0.75
    %v326 = vadd.f32 %v322, 0.75
    %v327 = vsub.f32 1.0, %v215
    %v328 = vsub.f32 1.0, %v216
    %v329 = vsub.f32 1.0, %v217
    %v330 = vsub.f32 1.0, %v218
    %v331 = vmul.f32 %v327, 0.75
    %v332 = vmul.f32 %v328, 0.75
    %v333 = vmul.f32 %v329, 0.75
    %v334 = vmul.f32 %v330, 0.75
    %v335 = vmul.f32 %v323, %v275
    %v336 = vmul.f32 %v324, %v276
    %v337 = vmul.f32 %v325, %v277
    %v338 = vmul.f32 %v326, %v278
    %v339 = vmul.f32 %v331, %v210
    %v340 = vmul.f32 %v332, %v211
    %v341 = vmul.f32 %v333, %v212
    %v342 = vmul.f32 %v334, %v213
    %v343 = vsub.f32 %v335, %v339
    %v344 = vsub.f32 %v336, %v340
    %v345 = vsub.f32 %v337, %v341
    %v346 = vsub.f32 %v338, %v342
    %v347 = vmul.f32 %v343, %v315
    %v348 = vmul.f32 %v344, %v316
    %v349 = vmul.f32 %v345, %v317
    %v350 = vmul.f32 %v346, %v318
    %v351 = vadd.f32 %v347, %v348
    %v352 = vadd.f32 %v351, %v349
    %v353 = vadd.f32 %v352, %v350
    %v354 = vadd.f32 %v208, %v353
    %v355 = vld [vmem:[#allocation7] sm:$0xff]
    %v356 = vadd.f32 %v355, %v354
    %357 = vst [vmem:[#allocation7] sm:$0xff] %v356
    // Predicated region
    $region22: #{tpu_custom_call.1} parent=1 // pred_check
      _
    $region23: #{tpu_custom_call.1} parent=1 // pred_check_branch
      %359 = sbr.rel (0) target = $region25
    $region24: #{tpu_custom_call.1} parent=1 // pred_region
      %s361 = ssub.s32 128, 128
      %362 = vsyncadd [#allocation4], %s361
      %s364 = sshll.u32 [#allocation7], 4
      %s365 = int_to_ptr.vmem [resolvable:$true] %s364
      %367 = dma.vmem_to_hbm [thread:$0]  %s365, 128, %s2, [#allocation4]
    $region25: #{tpu_custom_call.1} parent=1 // pred_fallthru
      _
    // Predicated region
    $region26: #{tpu_custom_call.1} parent=1 // pred_check
      _
    $region27: #{tpu_custom_call.1} parent=1 // pred_check_branch
      %369 = sbr.rel (0) target = $region29
    $region28: #{tpu_custom_call.1} parent=1 // pred_region
      %370 = dma.done [#allocation4], 128
    $region29: #{tpu_custom_call.1} parent=1 // pred_fallthru
      _
    %371 = vsyncpa [#allocation3], 1
    %372 = vsyncpa [#allocation6], 1
    %373 = vsyncpa [#allocation4], 1

</llo_original>
